<compile_context>
chip_gen: v5e
topology: v5e:2x2
jax: 0.10.0
libtpu: 0.0.40
codegen_flags: <defaults>
</compile_context>

<pallas_src>
import functools

import jax
import jax.numpy as jnp
from jax import lax
from jax.experimental import pallas as pl
from jax.experimental.pallas import tpu as pltpu

LANE = 128
_LAYERS = ("enc_gc1", "enc_gc2", "attr_gc1", "attr_gc2", "struct_gc1")


# ------------------------------ small helpers ---------------------------------- #

def _round_up(n, m):
    return (n + m - 1) // m * m


def _device_kind():
    try:
        return jax.devices()[0].device_kind.lower()
    except Exception:
        return ""


def _preferred_tile():
    """256-aligned row tiles feed the 2x256x256 MXU on v6e/v7x; 128 on v5e/older."""
    kind = _device_kind()
    return 256 if ("v6" in kind or "v7" in kind) else 128


def _struct_out_dtype():
    """bf16 struct writeback halves the N^2 HBM traffic on HBM-poor v5e; f32 elsewhere."""
    kind = _device_kind()
    return jnp.bfloat16 if ("v5e" in kind or "v5 lite" in kind) else jnp.float32


def _vmem_limit(buffer_bytes):
    """Explicit scoped-VMEM budget: live buffers + pipelining headroom, clamped under
    v7x's 64 MiB physical VMEM per TensorCore (v5e/v6e have 128 MiB physical)."""
    return int(min(max(buffer_bytes + (8 << 20), 16 << 20), 60 << 20))


def _cparams(dim_semantics, buffer_bytes):
    return pltpu.CompilerParams(dimension_semantics=dim_semantics,
                                vmem_limit_bytes=_vmem_limit(buffer_bytes))


_VMEM = pltpu.MemorySpace.VMEM


# --------------------------------- kernels ------------------------------------- #

def support_kernel(x_ref, w_ref, out_ref):
    """support_tile = x_tile @ W.  f32 MXU accumulation, bf16 stored at the pop
    (single cast at store; no extra f32 round-trip before the adj matmul)."""
    out_ref[...] = jnp.dot(x_ref[...], w_ref[...],
                           preferred_element_type=jnp.float32).astype(out_ref.dtype)


def gcn_agg_kernel(adj_ref, support_ref, b_ref, out_ref):
    """out_tile = relu(adj_row_tile @ support + b).

    adj_ref     : (TM, N_pad) bf16 streamed row block of the adjacency
    support_ref : (N_pad, P)  bf16 full support, resident in VMEM across the grid
    b_ref       : (1, P)      f32
    out_ref     : (TM, P)     bf16 (intermediate layers) or f32 (x_hat)
    Bias + ReLU epilogue stays in f32 on the VPU (correct/fast on v5e too).
    """
    acc = jnp.dot(adj_ref[...], support_ref[...], preferred_element_type=jnp.float32)
    out_ref[...] = jnp.maximum(acc + b_ref[...], 0.0).astype(out_ref.dtype)


def gram_kernel(si_ref, sj_ref, out_ref):
    """out[i_tile, j_tile] = s_i @ s_j^T via contraction on the feature dim of both
    operands — per-tile only, so no full-matrix transpose is ever materialized."""
    out_ref[...] = lax.dot_general(
        si_ref[...], sj_ref[...],
        dimension_numbers=(((1,), (1,)), ((), ())),
        preferred_element_type=jnp.float32).astype(out_ref.dtype)


# ----------------------------- pallas_call wrappers ----------------------------- #

def _support(h_p, w_p, tm):
    n_pad, p_in = h_p.shape
    p_out = w_p.shape[1]
    buf_bytes = 2 * tm * p_in * 2 + p_in * p_out * 2 + 2 * tm * p_out * 2
    return pl.pallas_call(
        support_kernel,
        grid=(n_pad // tm,),
        in_specs=[
            pl.BlockSpec((tm, p_in), lambda i: (i, 0), memory_space=_VMEM),
            pl.BlockSpec((p_in, p_out), lambda i: (0, 0), memory_space=_VMEM),
        ],
        out_specs=pl.BlockSpec((tm, p_out), lambda i: (i, 0), memory_space=_VMEM),
        out_shape=jax.ShapeDtypeStruct((n_pad, p_out), jnp.bfloat16),
        compiler_params=_cparams(("parallel",), buf_bytes),
        cost_estimate=pl.CostEstimate(
            flops=2 * n_pad * p_in * p_out, transcendentals=0,
            bytes_accessed=2 * (n_pad * p_in + p_in * p_out + n_pad * p_out)),
    )(h_p, w_p)


def _aggregate(adj_p, support_p, b_p, tm, out_dtype):
    n_pad = adj_p.shape[0]
    p = support_p.shape[1]
    ob = jnp.dtype(out_dtype).itemsize
    # adj row tiles double-buffer (default Buffered(2)); support + bias resident once.
    buf_bytes = 2 * tm * n_pad * 2 + n_pad * p * 2 + p * 4 + 2 * tm * p * ob
    return pl.pallas_call(
        gcn_agg_kernel,
        grid=(n_pad // tm,),
        in_specs=[
            pl.BlockSpec((tm, n_pad), lambda i: (i, 0), memory_space=_VMEM),
            pl.BlockSpec((n_pad, p), lambda i: (0, 0), memory_space=_VMEM),
            pl.BlockSpec((1, p), lambda i: (0, 0), memory_space=_VMEM),
        ],
        out_specs=pl.BlockSpec((tm, p), lambda i: (i, 0), memory_space=_VMEM),
        out_shape=jax.ShapeDtypeStruct((n_pad, p), out_dtype),
        compiler_params=_cparams(("parallel",), buf_bytes),
        cost_estimate=pl.CostEstimate(
            flops=2 * n_pad * n_pad * p, transcendentals=0,
            bytes_accessed=2 * n_pad * n_pad + 2 * n_pad * p + 4 * p + ob * n_pad * p),
    )(adj_p, support_p, b_p)


def _gram(s_p, tm, out_dtype):
    n_pad, p = s_p.shape
    ob = jnp.dtype(out_dtype).itemsize
    buf_bytes = 4 * tm * p * 2 + 2 * tm * tm * ob
    return pl.pallas_call(
        gram_kernel,
        grid=(n_pad // tm, n_pad // tm),
        in_specs=[
            pl.BlockSpec((tm, p), lambda i, j: (i, 0), memory_space=_VMEM),
            pl.BlockSpec((tm, p), lambda i, j: (j, 0), memory_space=_VMEM),
        ],
        out_specs=pl.BlockSpec((tm, tm), lambda i, j: (i, j), memory_space=_VMEM),
        out_shape=jax.ShapeDtypeStruct((n_pad, n_pad), out_dtype),
        compiler_params=_cparams(("parallel", "parallel"), buf_bytes),
        cost_estimate=pl.CostEstimate(
            flops=2 * n_pad * n_pad * p, transcendentals=0,
            bytes_accessed=4 * n_pad * p + ob * n_pad * n_pad),
    )(s_p, s_p)


# ---------------------------- prepare (one-time) -------------------------------- #

def prepare_dominant(params, adj, feat_size, hidden_size):
    """One-time padding / bf16 casting of the static graph and weights.
    Hoisted out of the per-forward path so the (N, N) adjacency is padded/cast once."""
    n = adj.shape[0]
    p = _round_up(max(feat_size, hidden_size), LANE)       # lane-dense feature dim
    tm = min(_preferred_tile(), _round_up(n, LANE))         # generation-specific row tile
    n_pad = _round_up(n, tm)

    adj_p = jnp.zeros((n_pad, n_pad), jnp.bfloat16).at[:n, :n].set(
        adj.astype(jnp.bfloat16))

    padded = {}
    for name in _LAYERS:
        w, b = params[name]
        w_p = jnp.zeros((p, p), jnp.bfloat16).at[: w.shape[0], : w.shape[1]].set(
            w.astype(jnp.bfloat16))
        b_p = jnp.zeros((1, p), jnp.float32).at[0, : b.shape[0]].set(
            b.astype(jnp.float32))
        padded[name] = (w_p, b_p)

    return dict(adj=adj_p, params=padded, n=n, feat=feat_size, p=p,
                n_pad=n_pad, tm=tm)


# ---------------------------------- forward ------------------------------------- #

def dominant_forward(prep, x, struct_dtype=None):
    """DOMINANT forward (eval mode; dropout = identity). Returns (struct_rec, x_hat).

    Zero padding is exact: padded feature columns stay zero through every layer;
    padded node rows never contaminate valid rows (their adj entries are zero) and are
    sliced off before returning.
    """
    if struct_dtype is None:
        struct_dtype = _struct_out_dtype()

    n, feat, p = prep["n"], prep["feat"], prep["p"]
    n_pad, tm = prep["n_pad"], prep["tm"]
    adj_p = prep["adj"]
    pp = prep["params"]

    x_p = jnp.zeros((n_pad, p), jnp.bfloat16).at[:n, :feat].set(
        x.astype(jnp.bfloat16))

    def gcn(h, name, out_dtype=jnp.bfloat16):
        w_p, b_p = pp[name]
        support = _support(h, w_p, tm)                 # x @ W, once per layer
        return _aggregate(adj_p, support, b_p, tm, out_dtype)

    # shared encoder (dropout = identity in eval mode)
    h = gcn(x_p, "enc_gc1")
    h = gcn(h, "enc_gc2")

    # attribute decoder
    a = gcn(h, "attr_gc1")
    x_hat_p = gcn(a, "attr_gc2", out_dtype=jnp.float32)

    # structure decoder
    s = gcn(h, "struct_gc1")
    struct_p = _gram(s, tm, struct_dtype)

    return struct_p[:n, :n], x_hat_p[:n, :feat]


# ------------------------------ parameter init ---------------------------------- #

def init_gc_params(key, fin, fout):
    """Kipf-GCN style uniform init (deterministic via key)."""
    kw, kb = jax.random.split(key)
    stdv = 1.0 / jnp.sqrt(jnp.float32(fout))
    w = jax.random.uniform(kw, (fin, fout), jnp.float32, minval=-stdv, maxval=stdv)
    b = jax.random.uniform(kb, (fout,), jnp.float32, minval=-stdv, maxval=stdv)
    return w, b


def init_dominant_params(key, feat_size, hidden_size):
    keys = jax.random.split(key, 5)
    return {
        "enc_gc1": init_gc_params(keys[0], feat_size, hidden_size),
        "enc_gc2": init_gc_params(keys[1], hidden_size, hidden_size),
        "attr_gc1": init_gc_params(keys[2], hidden_size, hidden_size),
        "attr_gc2": init_gc_params(keys[3], hidden_size, feat_size),
        "struct_gc1": init_gc_params(keys[4], hidden_size, hidden_size),
    }


# ------------------------------------ main --------------------------------------- #

if __name__ == "__main__":
    N = 64          # number of nodes
    FEAT = 32       # feat_size
    HID = 16        # hidden_size

    key = jax.random.PRNGKey(0)
    k_params, k_x, k_adj = jax.random.split(key, 3)

    params = init_dominant_params(k_params, FEAT, HID)
    x = jax.random.normal(k_x, (N, FEAT), jnp.float32)

    # symmetric, row-normalized dense adjacency (deterministic)
    a_raw = (jax.random.uniform(k_adj, (N, N)) < 0.1).astype(jnp.float32)
    a_sym = jnp.maximum(a_raw, a_raw.T) + jnp.eye(N, dtype=jnp.float32)
    adj = a_sym / jnp.sum(a_sym, axis=1, keepdims=True)

    prep = prepare_dominant(params, adj, FEAT, HID)   # one-time: pad/cast adj + weights
    forward = jax.jit(functools.partial(dominant_forward, prep))

    struct_rec, x_hat = forward(x)
    jax.block_until_ready((struct_rec, x_hat))

    assert struct_rec.shape == (N, N)
    assert x_hat.shape == (N, FEAT)

    # ---- reference using the same bf16-MXU / f32-accumulate quantization ----
    def ref_gcn(h, w, b, adj_):
        sup = jnp.dot(h.astype(jnp.bfloat16), w.astype(jnp.bfloat16),
                      preferred_element_type=jnp.float32).astype(jnp.bfloat16)
        out = jnp.dot(adj_.astype(jnp.bfloat16), sup,
                      preferred_element_type=jnp.float32)
        return jnp.maximum(out + b, 0.0)

    h_r = ref_gcn(x, *params["enc_gc1"], adj)
    h_r = ref_gcn(h_r, *params["enc_gc2"], adj)
    a_r = ref_gcn(h_r, *params["attr_gc1"], adj)
    x_hat_r = ref_gcn(a_r, *params["attr_gc2"], adj)
    s_r = ref_gcn(h_r, *params["struct_gc1"], adj).astype(jnp.bfloat16)
    struct_r = jnp.dot(s_r, s_r.T, preferred_element_type=jnp.float32)

    assert jnp.allclose(x_hat, x_hat_r, atol=3e-2, rtol=3e-2)
    assert jnp.allclose(struct_rec.astype(jnp.float32), struct_r, atol=3e-2, rtol=3e-2)

    print("KERNEL_OK")
</pallas_src>

<mosaic_0001>
module attributes {stable_mosaic.version = 11 : i64} {
  func.func @support_kernel(%arg0: i32, %arg1: memref<128x128xbf16, #tpu.memory_space<vmem>>, %arg2: memref<128x128xbf16, #tpu.memory_space<vmem>>, %arg3: memref<128x128xbf16, #tpu.memory_space<vmem>>) attributes {dimension_semantics = [#tpu.dimension_semantics<parallel>], iteration_bounds = array<i64: 1>, scalar_prefetch = 0 : i64, scratch_operands = 0 : i64, tpu.core_type = #tpu.core_type<tc>, window_params = [{transform_indices = @transform_0, window_bounds = array<i64: 128, 128>}, {pipeline_mode = #tpu.pipeline_mode<synchronous>, transform_indices = @transform_1, window_bounds = array<i64: 128, 128>}, {transform_indices = @transform_2, window_bounds = array<i64: 128, 128>}]} {
    %c0 = arith.constant 0 : index
    %c0_0 = arith.constant 0 : index
    %0 = vector.load %arg1[%c0, %c0_0] : memref<128x128xbf16, #tpu.memory_space<vmem>>, vector<128x128xbf16>
    %c0_1 = arith.constant 0 : index
    %c0_2 = arith.constant 0 : index
    %1 = vector.load %arg2[%c0_1, %c0_2] : memref<128x128xbf16, #tpu.memory_space<vmem>>, vector<128x128xbf16>
    %cst = arith.constant dense<0.000000e+00> : vector<128x128xf32>
    %2 = tpu.matmul %0, %1, %cst {dimension_numbers = #tpu.dot_dimension_numbers<[1], [0], [0], [1], [0, 0, 1, 1], [], []>} : vector<128x128xbf16>, vector<128x128xbf16>, vector<128x128xf32> -> vector<128x128xf32>
    %3 = arith.truncf %2 : vector<128x128xf32> to vector<128x128xbf16>
    %c0_3 = arith.constant 0 : index
    %c0_4 = arith.constant 0 : index
    %4 = vector.load %arg3[%c0_3, %c0_4] : memref<128x128xbf16, #tpu.memory_space<vmem>>, vector<128x128xbf16>
    tpu.vector_store %arg3[%c0_3, %c0_4], %3 {strides = array<i32>} : memref<128x128xbf16, #tpu.memory_space<vmem>>, vector<128x128xbf16>,
    return
  }
  func.func @transform_0(%arg0: i32) -> (i32, i32) {
    %c0_i32 = arith.constant 0 : i32
    %c0_i32_0 = arith.constant 0 : i32
    return %arg0, %c0_i32 : i32, i32
  }
  func.func @transform_1(%arg0: i32) -> (i32, i32) {
    %c0_i32 = arith.constant 0 : i32
    %c0_i32_0 = arith.constant 0 : i32
    %c0_i32_1 = arith.constant 0 : i32
    return %c0_i32, %c0_i32_0 : i32, i32
  }
  func.func @transform_2(%arg0: i32) -> (i32, i32) {
    %c0_i32 = arith.constant 0 : i32
    %c0_i32_0 = arith.constant 0 : i32
    return %arg0, %c0_i32 : i32, i32
  }
}

module attributes {stable_mosaic.version = 11 : i64} {
  func.func @gram_kernel(%arg0: i32, %arg1: i32, %arg2: memref<128x128xbf16, #tpu.memory_space<vmem>>, %arg3: memref<128x128xbf16, #tpu.memory_space<vmem>>, %arg4: memref<128x128xf32, #tpu.memory_space<vmem>>) attributes {dimension_semantics = [#tpu.dimension_semantics<parallel>, #tpu.dimension_semantics<parallel>], iteration_bounds = array<i64: 1, 1>, scalar_prefetch = 0 : i64, scratch_operands = 0 : i64, tpu.core_type = #tpu.core_type<tc>, window_params = [{transform_indices = @transform_0, window_bounds = array<i64: 128, 128>}, {transform_indices = @transform_1, window_bounds = array<i64: 128, 128>}, {transform_indices = @transform_2, window_bounds = array<i64: 128, 128>}]} {
    %c0 = arith.constant 0 : index
    %c0_0 = arith.constant 0 : index
    %0 = vector.load %arg2[%c0, %c0_0] : memref<128x128xbf16, #tpu.memory_space<vmem>>, vector<128x128xbf16>
    %c0_1 = arith.constant 0 : index
    %c0_2 = arith.constant 0 : index
    %1 = vector.load %arg3[%c0_1, %c0_2] : memref<128x128xbf16, #tpu.memory_space<vmem>>, vector<128x128xbf16>
    %cst = arith.constant dense<0.000000e+00> : vector<128x128xf32>
    %2 = tpu.matmul %0, %1, %cst {dimension_numbers = #tpu.dot_dimension_numbers<[1], [1], [0], [0], [0, 0, 1, 0], [], []>} : vector<128x128xbf16>, vector<128x128xbf16>, vector<128x128xf32> -> vector<128x128xf32>
    %c0_3 = arith.constant 0 : index
    %c0_4 = arith.constant 0 : index
    %3 = vector.load %arg4[%c0_3, %c0_4] : memref<128x128xf32, #tpu.memory_space<vmem>>, vector<128x128xf32>
    tpu.vector_store %arg4[%c0_3, %c0_4], %2 {strides = array<i32>} : memref<128x128xf32, #tpu.memory_space<vmem>>, vector<128x128xf32>,
    return
  }
  func.func @transform_0(%arg0: i32, %arg1: i32) -> (i32, i32) {
    %c0_i32 = arith.constant 0 : i32
    %c0_i32_0 = arith.constant 0 : i32
    return %arg0, %c0_i32 : i32, i32
  }
  func.func @transform_1(%arg0: i32, %arg1: i32) -> (i32, i32) {
    %c0_i32 = arith.constant 0 : i32
    %c0_i32_0 = arith.constant 0 : i32
    return %arg1, %c0_i32 : i32, i32
  }
  func.func @transform_2(%arg0: i32, %arg1: i32) -> (i32, i32) {
    %c0_i32 = arith.constant 0 : i32
    return %arg0, %arg1 : i32, i32
  }
}

module attributes {stable_mosaic.version = 11 : i64} {
  func.func @gcn_agg_kernel(%arg0: i32, %arg1: memref<128x128xbf16, #tpu.memory_space<vmem>>, %arg2: memref<128x128xbf16, #tpu.memory_space<vmem>>, %arg3: memref<1x128xf32, #tpu.memory_space<vmem>>, %arg4: memref<128x128xbf16, #tpu.memory_space<vmem>>) attributes {dimension_semantics = [#tpu.dimension_semantics<parallel>], iteration_bounds = array<i64: 1>, scalar_prefetch = 0 : i64, scratch_operands = 0 : i64, tpu.core_type = #tpu.core_type<tc>, window_params = [{transform_indices = @transform_0, window_bounds = array<i64: 128, 128>}, {pipeline_mode = #tpu.pipeline_mode<synchronous>, transform_indices = @transform_1, window_bounds = array<i64: 128, 128>}, {pipeline_mode = #tpu.pipeline_mode<synchronous>, transform_indices = @transform_2, window_bounds = array<i64: 1, 128>}, {transform_indices = @transform_3, window_bounds = array<i64: 128, 128>}]} {
    %c0 = arith.constant 0 : index
    %c0_0 = arith.constant 0 : index
    %0 = vector.load %arg1[%c0, %c0_0] : memref<128x128xbf16, #tpu.memory_space<vmem>>, vector<128x128xbf16>
    %c0_1 = arith.constant 0 : index
    %c0_2 = arith.constant 0 : index
    %1 = vector.load %arg2[%c0_1, %c0_2] : memref<128x128xbf16, #tpu.memory_space<vmem>>, vector<128x128xbf16>
    %cst = arith.constant dense<0.000000e+00> : vector<128x128xf32>
    %2 = tpu.matmul %0, %1, %cst {dimension_numbers = #tpu.dot_dimension_numbers<[1], [0], [0], [1], [0, 0, 1, 1], [], []>} : vector<128x128xbf16>, vector<128x128xbf16>, vector<128x128xf32> -> vector<128x128xf32>
    %c0_3 = arith.constant 0 : index
    %c0_4 = arith.constant 0 : index
    %3 = vector.load %arg3[%c0_3, %c0_4] : memref<1x128xf32, #tpu.memory_space<vmem>>, vector<1x128xf32>
    %4 = vector.broadcast %3 : vector<1x128xf32> to vector<128x128xf32>
    %5 = arith.addf %2, %4 : vector<128x128xf32>
    %cst_5 = arith.constant 0.000000e+00 : f32
    %6 = vector.broadcast %cst_5 : f32 to vector<128x128xf32>
    %7 = arith.maximumf %5, %6 : vector<128x128xf32>
    %8 = arith.truncf %7 : vector<128x128xf32> to vector<128x128xbf16>
    %c0_6 = arith.constant 0 : index
    %c0_7 = arith.constant 0 : index
    %9 = vector.load %arg4[%c0_6, %c0_7] : memref<128x128xbf16, #tpu.memory_space<vmem>>, vector<128x128xbf16>
    tpu.vector_store %arg4[%c0_6, %c0_7], %8 {strides = array<i32>} : memref<128x128xbf16, #tpu.memory_space<vmem>>, vector<128x128xbf16>,
    return
  }
  func.func @transform_0(%arg0: i32) -> (i32, i32) {
    %c0_i32 = arith.constant 0 : i32
    %c0_i32_0 = arith.constant 0 : i32
    return %arg0, %c0_i32 : i32, i32
  }
  func.func @transform_1(%arg0: i32) -> (i32, i32) {
    %c0_i32 = arith.constant 0 : i32
    %c0_i32_0 = arith.constant 0 : i32
    %c0_i32_1 = arith.constant 0 : i32
    return %c0_i32, %c0_i32_0 : i32, i32
  }
  func.func @transform_2(%arg0: i32) -> (i32, i32) {
    %c0_i32 = arith.constant 0 : i32
    %c0_i32_0 = arith.constant 0 : i32
    %c0_i32_1 = arith.constant 0 : i32
    return %c0_i32, %c0_i32_0 : i32, i32
  }
  func.func @transform_3(%arg0: i32) -> (i32, i32) {
    %c0_i32 = arith.constant 0 : i32
    %c0_i32_0 = arith.constant 0 : i32
    return %arg0, %c0_i32 : i32, i32
  }
}

module attributes {stable_mosaic.version = 11 : i64} {
  func.func @gcn_agg_kernel(%arg0: i32, %arg1: memref<128x128xbf16, #tpu.memory_space<vmem>>, %arg2: memref<128x128xbf16, #tpu.memory_space<vmem>>, %arg3: memref<1x128xf32, #tpu.memory_space<vmem>>, %arg4: memref<128x128xf32, #tpu.memory_space<vmem>>) attributes {dimension_semantics = [#tpu.dimension_semantics<parallel>], iteration_bounds = array<i64: 1>, scalar_prefetch = 0 : i64, scratch_operands = 0 : i64, tpu.core_type = #tpu.core_type<tc>, window_params = [{transform_indices = @transform_0, window_bounds = array<i64: 128, 128>}, {pipeline_mode = #tpu.pipeline_mode<synchronous>, transform_indices = @transform_1, window_bounds = array<i64: 128, 128>}, {pipeline_mode = #tpu.pipeline_mode<synchronous>, transform_indices = @transform_2, window_bounds = array<i64: 1, 128>}, {transform_indices = @transform_3, window_bounds = array<i64: 128, 128>}]} {
    %c0 = arith.constant 0 : index
    %c0_0 = arith.constant 0 : index
    %0 = vector.load %arg1[%c0, %c0_0] : memref<128x128xbf16, #tpu.memory_space<vmem>>, vector<128x128xbf16>
    %c0_1 = arith.constant 0 : index
    %c0_2 = arith.constant 0 : index
    %1 = vector.load %arg2[%c0_1, %c0_2] : memref<128x128xbf16, #tpu.memory_space<vmem>>, vector<128x128xbf16>
    %cst = arith.constant dense<0.000000e+00> : vector<128x128xf32>
    %2 = tpu.matmul %0, %1, %cst {dimension_numbers = #tpu.dot_dimension_numbers<[1], [0], [0], [1], [0, 0, 1, 1], [], []>} : vector<128x128xbf16>, vector<128x128xbf16>, vector<128x128xf32> -> vector<128x128xf32>
    %c0_3 = arith.constant 0 : index
    %c0_4 = arith.constant 0 : index
    %3 = vector.load %arg3[%c0_3, %c0_4] : memref<1x128xf32, #tpu.memory_space<vmem>>, vector<1x128xf32>
    %4 = vector.broadcast %3 : vector<1x128xf32> to vector<128x128xf32>
    %5 = arith.addf %2, %4 : vector<128x128xf32>
    %cst_5 = arith.constant 0.000000e+00 : f32
    %6 = vector.broadcast %cst_5 : f32 to vector<128x128xf32>
    %7 = arith.maximumf %5, %6 : vector<128x128xf32>
    %c0_6 = arith.constant 0 : index
    %c0_7 = arith.constant 0 : index
    %8 = vector.load %arg4[%c0_6, %c0_7] : memref<128x128xf32, #tpu.memory_space<vmem>>, vector<128x128xf32>
    tpu.vector_store %arg4[%c0_6, %c0_7], %7 {strides = array<i32>} : memref<128x128xf32, #tpu.memory_space<vmem>>, vector<128x128xf32>,
    return
  }
  func.func @transform_0(%arg0: i32) -> (i32, i32) {
    %c0_i32 = arith.constant 0 : i32
    %c0_i32_0 = arith.constant 0 : i32
    return %arg0, %c0_i32 : i32, i32
  }
  func.func @transform_1(%arg0: i32) -> (i32, i32) {
    %c0_i32 = arith.constant 0 : i32
    %c0_i32_0 = arith.constant 0 : i32
    %c0_i32_1 = arith.constant 0 : i32
    return %c0_i32, %c0_i32_0 : i32, i32
  }
  func.func @transform_2(%arg0: i32) -> (i32, i32) {
    %c0_i32 = arith.constant 0 : i32
    %c0_i32_0 = arith.constant 0 : i32
    %c0_i32_1 = arith.constant 0 : i32
    return %c0_i32, %c0_i32_0 : i32, i32
  }
  func.func @transform_3(%arg0: i32) -> (i32, i32) {
    %c0_i32 = arith.constant 0 : i32
    %c0_i32_0 = arith.constant 0 : i32
    return %arg0, %c0_i32 : i32, i32
  }
}

</mosaic_0001>

<llo_original>
// kernel: dominant_forward.21
$region0: #{dominant_forward.21}
  #allocation0 [shape = 'u32[]', space=smem, size = 0x4, offset = 0x4, fixed_abs, tag = 'smem constant byte address 0x4 - core index']
  #allocation1 [shape = 'u32[72,128]{1,0:T(1,128)}', space=vmem, size = 0x9000, scoped, tag = 'internal scratch']
  %s0 = inlined_call_operand.vmem [shape: bf16[128,128], index: 0, kind: input, shape index: {}, may-alias: {0,1}]
  %s1 = inlined_call_operand.vmem [shape: bf16[128,128], index: 1, kind: input, shape index: {}, may-alias: {0,1}]
  %s2 = inlined_call_operand.vmem [shape: f32[128,128], index: 2, kind: output, shape index: {}]
  %s3 = sld [smem:[#allocation0]]
  $region18: #{dominant_forward.21} parent=0
    _
  %s5 = ssub.s32 1, %s3
  %s6 = scalar_select 0, %s5, %s3
  // Predicated region
  $region2: #{dominant_forward.21} parent=0 // pred_check
    _
  $region3: #{dominant_forward.21} parent=0 // pred_check_branch
    %8 = sbr.rel (0) target = $region5
  $region4: #{dominant_forward.21} parent=0 // pred_region
    _
  $region5: #{dominant_forward.21} parent=0 // pred_fallthru
    _
  // Predicated region
  $region6: #{dominant_forward.21} parent=0 // pred_check
    _
  $region7: #{dominant_forward.21} parent=0 // pred_check_branch
    %10 = sbr.rel (0) target = $region9
  $region8: #{dominant_forward.21} parent=0 // pred_region
    _
  $region9: #{dominant_forward.21} parent=0 // pred_fallthru
    _
  %v11 = vld [vmem:[%s0] sm:$0xf]
  %v12 = vld [vmem:[%s0 + $0x4] sm:$0xf]
  %v13 = vld [vmem:[%s0 + $0x8] sm:$0xf]
  %v14 = vld [vmem:[%s0 + $0xc] sm:$0xf]
  %v15 = vld [vmem:[%s0 + $0x10] sm:$0xf]
  %v16 = vld [vmem:[%s0 + $0x14] sm:$0xf]
  %v17 = vld [vmem:[%s0 + $0x18] sm:$0xf]
  %v18 = vld [vmem:[%s0 + $0x1c] sm:$0xf]
  %v19 = vld [vmem:[%s0 + $0x20] sm:$0xf]
  %v20 = vld [vmem:[%s0 + $0x24] sm:$0xf]
  %v21 = vld [vmem:[%s0 + $0x28] sm:$0xf]
  %v22 = vld [vmem:[%s0 + $0x2c] sm:$0xf]
  %v23 = vld [vmem:[%s0 + $0x30] sm:$0xf]
  %v24 = vld [vmem:[%s0 + $0x34] sm:$0xf]
  %v25 = vld [vmem:[%s0 + $0x38] sm:$0xf]
  %v26 = vld [vmem:[%s0 + $0x3c] sm:$0xf]
  %v27 = vld [vmem:[%s1] sm:$0xf]
  %v28 = vld [vmem:[%s1 + $0x4] sm:$0xf]
  %v29 = vld [vmem:[%s1 + $0x8] sm:$0xf]
  %v30 = vld [vmem:[%s1 + $0xc] sm:$0xf]
  %v31 = vld [vmem:[%s1 + $0x10] sm:$0xf]
  %v32 = vld [vmem:[%s1 + $0x14] sm:$0xf]
  %v33 = vld [vmem:[%s1 + $0x18] sm:$0xf]
  %v34 = vld [vmem:[%s1 + $0x1c] sm:$0xf]
  %v35 = vld [vmem:[%s1 + $0x20] sm:$0xf]
  %v36 = vld [vmem:[%s1 + $0x24] sm:$0xf]
  %v37 = vld [vmem:[%s1 + $0x28] sm:$0xf]
  %v38 = vld [vmem:[%s1 + $0x2c] sm:$0xf]
  %v39 = vld [vmem:[%s1 + $0x30] sm:$0xf]
  %v40 = vld [vmem:[%s1 + $0x34] sm:$0xf]
  %v41 = vld [vmem:[%s1 + $0x38] sm:$0xf]
  %v42 = vld [vmem:[%s1 + $0x3c] sm:$0xf]
  %v59 = vunpack.c.l.b16 %v11
  %v60 = vunpack.c.l.b16 %v12
  %v61 = vunpack.c.l.b16 %v13
  %v62 = vunpack.c.l.b16 %v14
  %v63 = vunpack.c.l.b16 %v15
  %v64 = vunpack.c.l.b16 %v16
  %v65 = vunpack.c.l.b16 %v17
  %v66 = vunpack.c.l.b16 %v18
  %v67 = vunpack.c.l.b16 %v19
  %v68 = vunpack.c.l.b16 %v20
  %v69 = vunpack.c.l.b16 %v21
  %v70 = vunpack.c.l.b16 %v22
  %v71 = vunpack.c.l.b16 %v23
  %v72 = vunpack.c.l.b16 %v24
  %v73 = vunpack.c.l.b16 %v25
  %v74 = vunpack.c.l.b16 %v26
  %v75 = vpack.c.b16 %v60, %v59
  %v76 = vpack.c.b16 %v62, %v61
  %v77 = vpack.c.b16 %v64, %v63
  %v78 = vpack.c.b16 %v66, %v65
  %v79 = vpack.c.b16 %v68, %v67
  %v80 = vpack.c.b16 %v70, %v69
  %v81 = vpack.c.b16 %v72, %v71
  %v82 = vpack.c.b16 %v74, %v73
  %v107 = vunpack.c.l.b16 %v27
  %v108 = vunpack.c.l.b16 %v28
  %v109 = vunpack.c.l.b16 %v29
  %v110 = vunpack.c.l.b16 %v30
  %v111 = vunpack.c.l.b16 %v31
  %v112 = vunpack.c.l.b16 %v32
  %v113 = vunpack.c.l.b16 %v33
  %v114 = vunpack.c.l.b16 %v34
  %v115 = vunpack.c.l.b16 %v35
  %v116 = vunpack.c.l.b16 %v36
  %v117 = vunpack.c.l.b16 %v37
  %v118 = vunpack.c.l.b16 %v38
  %v119 = vunpack.c.l.b16 %v39
  %v120 = vunpack.c.l.b16 %v40
  %v121 = vunpack.c.l.b16 %v41
  %v122 = vunpack.c.l.b16 %v42
  %v123 = vpack.c.b16 %v108, %v107
  %v124 = vpack.c.b16 %v110, %v109
  %v125 = vpack.c.b16 %v112, %v111
  %v126 = vpack.c.b16 %v114, %v113
  %v127 = vpack.c.b16 %v116, %v115
  %v128 = vpack.c.b16 %v118, %v117
  %v129 = vpack.c.b16 %v120, %v119
  %v130 = vpack.c.b16 %v122, %v121
  %139 = vmatpush.bf16.xpose.msra.mxu0 %v130
  %140 = vmatpush.bf16.xpose.msra.mxu0 %v129
  %141 = vmatpush.bf16.xpose.msra.mxu0 %v128
  %142 = vmatpush.bf16.xpose.msra.mxu0 %v127
  %143 = vmatpush.bf16.xpose.msra.mxu0 %v126
  %144 = vmatpush.bf16.xpose.msra.mxu0 %v125
  %145 = vmatpush.bf16.xpose.msra.mxu0 %v124
  %146 = vmatpush.bf16.xpose.msra.mxu0 %v123
  %147 = vmatmul.bf16.gmra.mxu0 %v75
  %v148 = vpop.f32.mrf.mxu0
  %v149 = vadd.f32 0.0, %v148
  %v150 = vpop.f32.mrf.mxu0
  %v151 = vadd.f32 0.0, %v150
  %152 = vmatmul.bf16.gmra.mxu0 %v76
  %v153 = vpop.f32.mrf.mxu0
  %v154 = vadd.f32 0.0, %v153
  %v155 = vpop.f32.mrf.mxu0
  %v156 = vadd.f32 0.0, %v155
  %157 = vmatmul.bf16.gmra.mxu0 %v77
  %v158 = vpop.f32.mrf.mxu0
  %v159 = vadd.f32 0.0, %v158
  %v160 = vpop.f32.mrf.mxu0
  %v161 = vadd.f32 0.0, %v160
  %162 = vmatmul.bf16.gmra.mxu0 %v78
  %v163 = vpop.f32.mrf.mxu0
  %v164 = vadd.f32 0.0, %v163
  %v165 = vpop.f32.mrf.mxu0
  %v166 = vadd.f32 0.0, %v165
  %167 = vmatmul.bf16.gmra.mxu0 %v79
  %v168 = vpop.f32.mrf.mxu0
  %v169 = vadd.f32 0.0, %v168
  %v170 = vpop.f32.mrf.mxu0
  %v171 = vadd.f32 0.0, %v170
  %172 = vmatmul.bf16.gmra.mxu0 %v80
  %v173 = vpop.f32.mrf.mxu0
  %v174 = vadd.f32 0.0, %v173
  %v175 = vpop.f32.mrf.mxu0
  %v176 = vadd.f32 0.0, %v175
  %177 = vmatmul.bf16.gmra.mxu0 %v81
  %v178 = vpop.f32.mrf.mxu0
  %v179 = vadd.f32 0.0, %v178
  %v180 = vpop.f32.mrf.mxu0
  %v181 = vadd.f32 0.0, %v180
  %182 = vmatmul.bf16.gmra.mxu0 %v82
  %v183 = vpop.f32.mrf.mxu0
  %v184 = vadd.f32 0.0, %v183
  %v185 = vpop.f32.mrf.mxu0
  %v186 = vadd.f32 0.0, %v185
  %187 = vdwg.mxu0
  %188 = vst [vmem:[%s2] sm:$0xff] %v149
  %189 = vst [vmem:[%s2 + $0x8] sm:$0xff] %v151
  %190 = vst [vmem:[%s2 + $0x10] sm:$0xff] %v154
  %191 = vst [vmem:[%s2 + $0x18] sm:$0xff] %v156
  %192 = vst [vmem:[%s2 + $0x20] sm:$0xff] %v159
  %193 = vst [vmem:[%s2 + $0x28] sm:$0xff] %v161
  %194 = vst [vmem:[%s2 + $0x30] sm:$0xff] %v164
  %195 = vst [vmem:[%s2 + $0x38] sm:$0xff] %v166
  %196 = vst [vmem:[%s2 + $0x40] sm:$0xff] %v169
  %197 = vst [vmem:[%s2 + $0x48] sm:$0xff] %v171
  %198 = vst [vmem:[%s2 + $0x50] sm:$0xff] %v174
  %199 = vst [vmem:[%s2 + $0x58] sm:$0xff] %v176
  %200 = vst [vmem:[%s2 + $0x60] sm:$0xff] %v179
  %201 = vst [vmem:[%s2 + $0x68] sm:$0xff] %v181
  %202 = vst [vmem:[%s2 + $0x70] sm:$0xff] %v184
  %203 = vst [vmem:[%s2 + $0x78] sm:$0xff] %v186
  // Predicated region
  $region10: #{dominant_forward.21} parent=0 // pred_check
    _
  $region11: #{dominant_forward.21} parent=0 // pred_check_branch
    %205 = sbr.rel (0) target = $region13
  $region12: #{dominant_forward.21} parent=0 // pred_region
    _
  $region13: #{dominant_forward.21} parent=0 // pred_fallthru
    _
  // Predicated region
  $region14: #{dominant_forward.21} parent=0 // pred_check
    _
  $region15: #{dominant_forward.21} parent=0 // pred_check_branch
    %207 = sbr.rel (0) target = $region17
  $region16: #{dominant_forward.21} parent=0 // pred_region
    _
  $region17: #{dominant_forward.21} parent=0 // pred_fallthru
    _

// kernel: dominant_forward.11
$region0: #{dominant_forward.11}
  #allocation0 [shape = 'u32[]', space=smem, size = 0x4, offset = 0x4, fixed_abs, tag = 'smem constant byte address 0x4 - core index']
  #allocation1 [shape = 'u32[72,128]{1,0:T(1,128)}', space=vmem, size = 0x9000, scoped, tag = 'internal scratch']
  %s0 = inlined_call_operand.vmem [shape: bf16[128,128], index: 0, kind: input, shape index: {}]
  %s1 = inlined_call_operand.vmem [shape: bf16[128,128], index: 1, kind: input, shape index: {}]
  %s2 = inlined_call_operand.vmem [shape: bf16[128,128], index: 2, kind: output, shape index: {}]
  %s3 = sld [smem:[#allocation0]]
  $region18: #{dominant_forward.11} parent=0
    _
  %s5 = ssub.s32 1, %s3
  %s6 = scalar_select 0, %s5, %s3
  // Predicated region
  $region2: #{dominant_forward.11} parent=0 // pred_check
    _
  $region3: #{dominant_forward.11} parent=0 // pred_check_branch
    %8 = sbr.rel (0) target = $region5
  $region4: #{dominant_forward.11} parent=0 // pred_region
    _
  $region5: #{dominant_forward.11} parent=0 // pred_fallthru
    _
  // Predicated region
  $region6: #{dominant_forward.11} parent=0 // pred_check
    _
  $region7: #{dominant_forward.11} parent=0 // pred_check_branch
    %10 = sbr.rel (0) target = $region9
  $region8: #{dominant_forward.11} parent=0 // pred_region
    _
  $region9: #{dominant_forward.11} parent=0 // pred_fallthru
    _
  %v11 = vld [vmem:[%s0] sm:$0xf]
  %v12 = vld [vmem:[%s0 + $0x4] sm:$0xf]
  %v13 = vld [vmem:[%s0 + $0x8] sm:$0xf]
  %v14 = vld [vmem:[%s0 + $0xc] sm:$0xf]
  %v15 = vld [vmem:[%s0 + $0x10] sm:$0xf]
  %v16 = vld [vmem:[%s0 + $0x14] sm:$0xf]
  %v17 = vld [vmem:[%s0 + $0x18] sm:$0xf]
  %v18 = vld [vmem:[%s0 + $0x1c] sm:$0xf]
  %v19 = vld [vmem:[%s0 + $0x20] sm:$0xf]
  %v20 = vld [vmem:[%s0 + $0x24] sm:$0xf]
  %v21 = vld [vmem:[%s0 + $0x28] sm:$0xf]
  %v22 = vld [vmem:[%s0 + $0x2c] sm:$0xf]
  %v23 = vld [vmem:[%s0 + $0x30] sm:$0xf]
  %v24 = vld [vmem:[%s0 + $0x34] sm:$0xf]
  %v25 = vld [vmem:[%s0 + $0x38] sm:$0xf]
  %v26 = vld [vmem:[%s0 + $0x3c] sm:$0xf]
  %v27 = vld [vmem:[%s1] sm:$0xf]
  %v28 = vld [vmem:[%s1 + $0x4] sm:$0xf]
  %v29 = vld [vmem:[%s1 + $0x8] sm:$0xf]
  %v30 = vld [vmem:[%s1 + $0xc] sm:$0xf]
  %v31 = vld [vmem:[%s1 + $0x10] sm:$0xf]
  %v32 = vld [vmem:[%s1 + $0x14] sm:$0xf]
  %v33 = vld [vmem:[%s1 + $0x18] sm:$0xf]
  %v34 = vld [vmem:[%s1 + $0x1c] sm:$0xf]
  %v35 = vld [vmem:[%s1 + $0x20] sm:$0xf]
  %v36 = vld [vmem:[%s1 + $0x24] sm:$0xf]
  %v37 = vld [vmem:[%s1 + $0x28] sm:$0xf]
  %v38 = vld [vmem:[%s1 + $0x2c] sm:$0xf]
  %v39 = vld [vmem:[%s1 + $0x30] sm:$0xf]
  %v40 = vld [vmem:[%s1 + $0x34] sm:$0xf]
  %v41 = vld [vmem:[%s1 + $0x38] sm:$0xf]
  %v42 = vld [vmem:[%s1 + $0x3c] sm:$0xf]
  %v59 = vunpack.c.l.b16 %v11
  %v60 = vunpack.c.l.b16 %v12
  %v61 = vunpack.c.l.b16 %v13
  %v62 = vunpack.c.l.b16 %v14
  %v63 = vunpack.c.l.b16 %v15
  %v64 = vunpack.c.l.b16 %v16
  %v65 = vunpack.c.l.b16 %v17
  %v66 = vunpack.c.l.b16 %v18
  %v67 = vunpack.c.l.b16 %v19
  %v68 = vunpack.c.l.b16 %v20
  %v69 = vunpack.c.l.b16 %v21
  %v70 = vunpack.c.l.b16 %v22
  %v71 = vunpack.c.l.b16 %v23
  %v72 = vunpack.c.l.b16 %v24
  %v73 = vunpack.c.l.b16 %v25
  %v74 = vunpack.c.l.b16 %v26
  %v75 = vpack.c.b16 %v60, %v59
  %v76 = vpack.c.b16 %v62, %v61
  %v77 = vpack.c.b16 %v64, %v63
  %v78 = vpack.c.b16 %v66, %v65
  %v79 = vpack.c.b16 %v68, %v67
  %v80 = vpack.c.b16 %v70, %v69
  %v81 = vpack.c.b16 %v72, %v71
  %v82 = vpack.c.b16 %v74, %v73
  %v107 = vunpack.c.l.b16 %v27
  %v108 = vunpack.c.l.b16 %v28
  %v109 = vunpack.c.l.b16 %v29
  %v110 = vunpack.c.l.b16 %v30
  %v111 = vunpack.c.l.b16 %v31
  %v112 = vunpack.c.l.b16 %v32
  %v113 = vunpack.c.l.b16 %v33
  %v114 = vunpack.c.l.b16 %v34
  %v115 = vunpack.c.l.b16 %v35
  %v116 = vunpack.c.l.b16 %v36
  %v117 = vunpack.c.l.b16 %v37
  %v118 = vunpack.c.l.b16 %v38
  %v119 = vunpack.c.l.b16 %v39
  %v120 = vunpack.c.l.b16 %v40
  %v121 = vunpack.c.l.b16 %v41
  %v122 = vunpack.c.l.b16 %v42
  %v123 = vpack.c.b16 %v108, %v107
  %v124 = vpack.c.b16 %v110, %v109
  %v125 = vpack.c.b16 %v112, %v111
  %v126 = vpack.c.b16 %v114, %v113
  %v127 = vpack.c.b16 %v116, %v115
  %v128 = vpack.c.b16 %v118, %v117
  %v129 = vpack.c.b16 %v120, %v119
  %v130 = vpack.c.b16 %v122, %v121
  %139 = vmatpush.bf16.msra.mxu0 %v130
  %140 = vmatpush.bf16.msra.mxu0 %v129
  %141 = vmatpush.bf16.msra.mxu0 %v128
  %142 = vmatpush.bf16.msra.mxu0 %v127
  %143 = vmatpush.bf16.msra.mxu0 %v126
  %144 = vmatpush.bf16.msra.mxu0 %v125
  %145 = vmatpush.bf16.msra.mxu0 %v124
  %146 = vmatpush.bf16.msra.mxu0 %v123
  %147 = vmatmul.bf16.gmra.mxu0 %v75
  %v148 = vpop.f32.mrf.mxu0
  %v149 = vadd.f32 0.0, %v148
  %v150 = vpop.f32.mrf.mxu0
  %v151 = vadd.f32 0.0, %v150
  %152 = vmatmul.bf16.gmra.mxu0 %v76
  %v153 = vpop.f32.mrf.mxu0
  %v154 = vadd.f32 0.0, %v153
  %v155 = vpop.f32.mrf.mxu0
  %v156 = vadd.f32 0.0, %v155
  %157 = vmatmul.bf16.gmra.mxu0 %v77
  %v158 = vpop.f32.mrf.mxu0
  %v159 = vadd.f32 0.0, %v158
  %v160 = vpop.f32.mrf.mxu0
  %v161 = vadd.f32 0.0, %v160
  %162 = vmatmul.bf16.gmra.mxu0 %v78
  %v163 = vpop.f32.mrf.mxu0
  %v164 = vadd.f32 0.0, %v163
  %v165 = vpop.f32.mrf.mxu0
  %v166 = vadd.f32 0.0, %v165
  %167 = vmatmul.bf16.gmra.mxu0 %v79
  %v168 = vpop.f32.mrf.mxu0
  %v169 = vadd.f32 0.0, %v168
  %v170 = vpop.f32.mrf.mxu0
  %v171 = vadd.f32 0.0, %v170
  %172 = vmatmul.bf16.gmra.mxu0 %v80
  %v173 = vpop.f32.mrf.mxu0
  %v174 = vadd.f32 0.0, %v173
  %v175 = vpop.f32.mrf.mxu0
  %v176 = vadd.f32 0.0, %v175
  %177 = vmatmul.bf16.gmra.mxu0 %v81
  %v178 = vpop.f32.mrf.mxu0
  %v179 = vadd.f32 0.0, %v178
  %v180 = vpop.f32.mrf.mxu0
  %v181 = vadd.f32 0.0, %v180
  %182 = vmatmul.bf16.gmra.mxu0 %v82
  %v183 = vpop.f32.mrf.mxu0
  %v184 = vadd.f32 0.0, %v183
  %v185 = vpop.f32.mrf.mxu0
  %v186 = vadd.f32 0.0, %v185
  %187 = vdwg.mxu0
  %v188 = vpack.c.bf16 %v149, %v149
  %v189 = vpack.c.bf16 %v151, %v151
  %v190 = vpack.c.bf16 %v154, %v154
  %v191 = vpack.c.bf16 %v156, %v156
  %v192 = vpack.c.bf16 %v159, %v159
  %v193 = vpack.c.bf16 %v161, %v161
  %v194 = vpack.c.bf16 %v164, %v164
  %v195 = vpack.c.bf16 %v166, %v166
  %v196 = vpack.c.bf16 %v169, %v169
  %v197 = vpack.c.bf16 %v171, %v171
  %v198 = vpack.c.bf16 %v174, %v174
  %v199 = vpack.c.bf16 %v176, %v176
  %v200 = vpack.c.bf16 %v179, %v179
  %v201 = vpack.c.bf16 %v181, %v181
  %v202 = vpack.c.bf16 %v184, %v184
  %v203 = vpack.c.bf16 %v186, %v186
  %204 = vst [vmem:[%s2] sm:$0xf] %v188
  %205 = vst [vmem:[%s2 + $0x4] sm:$0xf] %v189
  %206 = vst [vmem:[%s2 + $0x8] sm:$0xf] %v190
  %207 = vst [vmem:[%s2 + $0xc] sm:$0xf] %v191
  %208 = vst [vmem:[%s2 + $0x10] sm:$0xf] %v192
  %209 = vst [vmem:[%s2 + $0x14] sm:$0xf] %v193
  %210 = vst [vmem:[%s2 + $0x18] sm:$0xf] %v194
  %211 = vst [vmem:[%s2 + $0x1c] sm:$0xf] %v195
  %212 = vst [vmem:[%s2 + $0x20] sm:$0xf] %v196
  %213 = vst [vmem:[%s2 + $0x24] sm:$0xf] %v197
  %214 = vst [vmem:[%s2 + $0x28] sm:$0xf] %v198
  %215 = vst [vmem:[%s2 + $0x2c] sm:$0xf] %v199
  %216 = vst [vmem:[%s2 + $0x30] sm:$0xf] %v200
  %217 = vst [vmem:[%s2 + $0x34] sm:$0xf] %v201
  %218 = vst [vmem:[%s2 + $0x38] sm:$0xf] %v202
  %219 = vst [vmem:[%s2 + $0x3c] sm:$0xf] %v203
  // Predicated region
  $region10: #{dominant_forward.11} parent=0 // pred_check
    _
  $region11: #{dominant_forward.11} parent=0 // pred_check_branch
    %221 = sbr.rel (0) target = $region13
  $region12: #{dominant_forward.11} parent=0 // pred_region
    _
  $region13: #{dominant_forward.11} parent=0 // pred_fallthru
    _
  // Predicated region
  $region14: #{dominant_forward.11} parent=0 // pred_check
    _
  $region15: #{dominant_forward.11} parent=0 // pred_check_branch
    %223 = sbr.rel (0) target = $region17
  $region16: #{dominant_forward.11} parent=0 // pred_region
    _
  $region17: #{dominant_forward.11} parent=0 // pred_fallthru
    _

// kernel: dominant_forward.18
$region0: #{dominant_forward.18}
  #allocation0 [shape = 'u32[]', space=smem, size = 0x4, offset = 0x4, fixed_abs, tag = 'smem constant byte address 0x4 - core index']
  #allocation1 [shape = 'u32[72,128]{1,0:T(1,128)}', space=vmem, size = 0x9000, scoped, tag = 'internal scratch']
  %s0 = inlined_call_operand.vmem [shape: bf16[128,128], index: 0, kind: input, shape index: {}]
  %s1 = inlined_call_operand.vmem [shape: bf16[128,128], index: 1, kind: input, shape index: {}]
  %s2 = inlined_call_operand.vmem [shape: f32[1,128], index: 2, kind: input, shape index: {}]
  %s3 = inlined_call_operand.vmem [shape: f32[128,128], index: 3, kind: output, shape index: {}]
  %s4 = sld [smem:[#allocation0]]
  $region22: #{dominant_forward.18} parent=0
    _
  %s6 = ssub.s32 1, %s4
  %s7 = scalar_select 0, %s6, %s4
  // Predicated region
  $region2: #{dominant_forward.18} parent=0 // pred_check
    _
  $region3: #{dominant_forward.18} parent=0 // pred_check_branch
    %9 = sbr.rel (0) target = $region5
  $region4: #{dominant_forward.18} parent=0 // pred_region
    _
  $region5: #{dominant_forward.18} parent=0 // pred_fallthru
    _
  // Predicated region
  $region6: #{dominant_forward.18} parent=0 // pred_check
    _
  $region7: #{dominant_forward.18} parent=0 // pred_check_branch
    %11 = sbr.rel (0) target = $region9
  $region8: #{dominant_forward.18} parent=0 // pred_region
    _
  $region9: #{dominant_forward.18} parent=0 // pred_fallthru
    _
  // Predicated region
  $region10: #{dominant_forward.18} parent=0 // pred_check
    _
  $region11: #{dominant_forward.18} parent=0 // pred_check_branch
    %13 = sbr.rel (0) target = $region13
  $region12: #{dominant_forward.18} parent=0 // pred_region
    _
  $region13: #{dominant_forward.18} parent=0 // pred_fallthru
    _
  %v14 = vld [vmem:[%s0] sm:$0xf]
  %v15 = vld [vmem:[%s0 + $0x4] sm:$0xf]
  %v16 = vld [vmem:[%s0 + $0x8] sm:$0xf]
  %v17 = vld [vmem:[%s0 + $0xc] sm:$0xf]
  %v18 = vld [vmem:[%s0 + $0x10] sm:$0xf]
  %v19 = vld [vmem:[%s0 + $0x14] sm:$0xf]
  %v20 = vld [vmem:[%s0 + $0x18] sm:$0xf]
  %v21 = vld [vmem:[%s0 + $0x1c] sm:$0xf]
  %v22 = vld [vmem:[%s0 + $0x20] sm:$0xf]
  %v23 = vld [vmem:[%s0 + $0x24] sm:$0xf]
  %v24 = vld [vmem:[%s0 + $0x28] sm:$0xf]
  %v25 = vld [vmem:[%s0 + $0x2c] sm:$0xf]
  %v26 = vld [vmem:[%s0 + $0x30] sm:$0xf]
  %v27 = vld [vmem:[%s0 + $0x34] sm:$0xf]
  %v28 = vld [vmem:[%s0 + $0x38] sm:$0xf]
  %v29 = vld [vmem:[%s0 + $0x3c] sm:$0xf]
  %v30 = vld [vmem:[%s1] sm:$0xf]
  %v31 = vld [vmem:[%s1 + $0x4] sm:$0xf]
  %v32 = vld [vmem:[%s1 + $0x8] sm:$0xf]
  %v33 = vld [vmem:[%s1 + $0xc] sm:$0xf]
  %v34 = vld [vmem:[%s1 + $0x10] sm:$0xf]
  %v35 = vld [vmem:[%s1 + $0x14] sm:$0xf]
  %v36 = vld [vmem:[%s1 + $0x18] sm:$0xf]
  %v37 = vld [vmem:[%s1 + $0x1c] sm:$0xf]
  %v38 = vld [vmem:[%s1 + $0x20] sm:$0xf]
  %v39 = vld [vmem:[%s1 + $0x24] sm:$0xf]
  %v40 = vld [vmem:[%s1 + $0x28] sm:$0xf]
  %v41 = vld [vmem:[%s1 + $0x2c] sm:$0xf]
  %v42 = vld [vmem:[%s1 + $0x30] sm:$0xf]
  %v43 = vld [vmem:[%s1 + $0x34] sm:$0xf]
  %v44 = vld [vmem:[%s1 + $0x38] sm:$0xf]
  %v45 = vld [vmem:[%s1 + $0x3c] sm:$0xf]
  %v46 = vld [vmem:[%s2] sm:$0x1]
  %v48 = vperm.slane %v46, 0
  %v66 = vunpack.c.l.b16 %v14
  %v67 = vunpack.c.l.b16 %v15
  %v68 = vunpack.c.l.b16 %v16
  %v69 = vunpack.c.l.b16 %v17
  %v70 = vunpack.c.l.b16 %v18
  %v71 = vunpack.c.l.b16 %v19
  %v72 = vunpack.c.l.b16 %v20
  %v73 = vunpack.c.l.b16 %v21
  %v74 = vunpack.c.l.b16 %v22
  %v75 = vunpack.c.l.b16 %v23
  %v76 = vunpack.c.l.b16 %v24
  %v77 = vunpack.c.l.b16 %v25
  %v78 = vunpack.c.l.b16 %v26
  %v79 = vunpack.c.l.b16 %v27
  %v80 = vunpack.c.l.b16 %v28
  %v81 = vunpack.c.l.b16 %v29
  %v82 = vpack.c.b16 %v67, %v66
  %v83 = vpack.c.b16 %v69, %v68
  %v84 = vpack.c.b16 %v71, %v70
  %v85 = vpack.c.b16 %v73, %v72
  %v86 = vpack.c.b16 %v75, %v74
  %v87 = vpack.c.b16 %v77, %v76
  %v88 = vpack.c.b16 %v79, %v78
  %v89 = vpack.c.b16 %v81, %v80
  %v114 = vunpack.c.l.b16 %v30
  %v115 = vunpack.c.l.b16 %v31
  %v116 = vunpack.c.l.b16 %v32
  %v117 = vunpack.c.l.b16 %v33
  %v118 = vunpack.c.l.b16 %v34
  %v119 = vunpack.c.l.b16 %v35
  %v120 = vunpack.c.l.b16 %v36
  %v121 = vunpack.c.l.b16 %v37
  %v122 = vunpack.c.l.b16 %v38
  %v123 = vunpack.c.l.b16 %v39
  %v124 = vunpack.c.l.b16 %v40
  %v125 = vunpack.c.l.b16 %v41
  %v126 = vunpack.c.l.b16 %v42
  %v127 = vunpack.c.l.b16 %v43
  %v128 = vunpack.c.l.b16 %v44
  %v129 = vunpack.c.l.b16 %v45
  %v130 = vpack.c.b16 %v115, %v114
  %v131 = vpack.c.b16 %v117, %v116
  %v132 = vpack.c.b16 %v119, %v118
  %v133 = vpack.c.b16 %v121, %v120
  %v134 = vpack.c.b16 %v123, %v122
  %v135 = vpack.c.b16 %v125, %v124
  %v136 = vpack.c.b16 %v127, %v126
  %v137 = vpack.c.b16 %v129, %v128
  %146 = vmatpush.bf16.msra.mxu0 %v137
  %147 = vmatpush.bf16.msra.mxu0 %v136
  %148 = vmatpush.bf16.msra.mxu0 %v135
  %149 = vmatpush.bf16.msra.mxu0 %v134
  %150 = vmatpush.bf16.msra.mxu0 %v133
  %151 = vmatpush.bf16.msra.mxu0 %v132
  %152 = vmatpush.bf16.msra.mxu0 %v131
  %153 = vmatpush.bf16.msra.mxu0 %v130
  %154 = vmatmul.bf16.gmra.mxu0 %v82
  %v155 = vpop.f32.mrf.mxu0
  %v156 = vadd.f32 %v48, %v155
  %v157 = vpop.f32.mrf.mxu0
  %v158 = vadd.f32 %v48, %v157
  %159 = vmatmul.bf16.gmra.mxu0 %v83
  %v160 = vpop.f32.mrf.mxu0
  %v161 = vadd.f32 %v48, %v160
  %v162 = vpop.f32.mrf.mxu0
  %v163 = vadd.f32 %v48, %v162
  %164 = vmatmul.bf16.gmra.mxu0 %v84
  %v165 = vpop.f32.mrf.mxu0
  %v166 = vadd.f32 %v48, %v165
  %v167 = vpop.f32.mrf.mxu0
  %v168 = vadd.f32 %v48, %v167
  %169 = vmatmul.bf16.gmra.mxu0 %v85
  %v170 = vpop.f32.mrf.mxu0
  %v171 = vadd.f32 %v48, %v170
  %v172 = vpop.f32.mrf.mxu0
  %v173 = vadd.f32 %v48, %v172
  %174 = vmatmul.bf16.gmra.mxu0 %v86
  %v175 = vpop.f32.mrf.mxu0
  %v176 = vadd.f32 %v48, %v175
  %v177 = vpop.f32.mrf.mxu0
  %v178 = vadd.f32 %v48, %v177
  %179 = vmatmul.bf16.gmra.mxu0 %v87
  %v180 = vpop.f32.mrf.mxu0
  %v181 = vadd.f32 %v48, %v180
  %v182 = vpop.f32.mrf.mxu0
  %v183 = vadd.f32 %v48, %v182
  %184 = vmatmul.bf16.gmra.mxu0 %v88
  %v185 = vpop.f32.mrf.mxu0
  %v186 = vadd.f32 %v48, %v185
  %v187 = vpop.f32.mrf.mxu0
  %v188 = vadd.f32 %v48, %v187
  %189 = vmatmul.bf16.gmra.mxu0 %v89
  %v190 = vpop.f32.mrf.mxu0
  %v191 = vadd.f32 %v48, %v190
  %v192 = vpop.f32.mrf.mxu0
  %v193 = vadd.f32 %v48, %v192
  %194 = vdwg.mxu0
  %v195 = vmax.f32 %v156, 0.0
  %v196 = vmax.f32 %v158, 0.0
  %v197 = vmax.f32 %v161, 0.0
  %v198 = vmax.f32 %v163, 0.0
  %v199 = vmax.f32 %v166, 0.0
  %v200 = vmax.f32 %v168, 0.0
  %v201 = vmax.f32 %v171, 0.0
  %v202 = vmax.f32 %v173, 0.0
  %v203 = vmax.f32 %v176, 0.0
  %v204 = vmax.f32 %v178, 0.0
  %v205 = vmax.f32 %v181, 0.0
  %v206 = vmax.f32 %v183, 0.0
  %v207 = vmax.f32 %v186, 0.0
  %v208 = vmax.f32 %v188, 0.0
  %v209 = vmax.f32 %v191, 0.0
  %v210 = vmax.f32 %v193, 0.0
  %211 = vst [vmem:[%s3] sm:$0xff] %v195
  %212 = vst [vmem:[%s3 + $0x8] sm:$0xff] %v196
  %213 = vst [vmem:[%s3 + $0x10] sm:$0xff] %v197
  %214 = vst [vmem:[%s3 + $0x18] sm:$0xff] %v198
  %215 = vst [vmem:[%s3 + $0x20] sm:$0xff] %v199
  %216 = vst [vmem:[%s3 + $0x28] sm:$0xff] %v200
  %217 = vst [vmem:[%s3 + $0x30] sm:$0xff] %v201
  %218 = vst [vmem:[%s3 + $0x38] sm:$0xff] %v202
  %219 = vst [vmem:[%s3 + $0x40] sm:$0xff] %v203
  %220 = vst [vmem:[%s3 + $0x48] sm:$0xff] %v204
  %221 = vst [vmem:[%s3 + $0x50] sm:$0xff] %v205
  %222 = vst [vmem:[%s3 + $0x58] sm:$0xff] %v206
  %223 = vst [vmem:[%s3 + $0x60] sm:$0xff] %v207
  %224 = vst [vmem:[%s3 + $0x68] sm:$0xff] %v208
  %225 = vst [vmem:[%s3 + $0x70] sm:$0xff] %v209
  %226 = vst [vmem:[%s3 + $0x78] sm:$0xff] %v210
  // Predicated region
  $region14: #{dominant_forward.18} parent=0 // pred_check
    _
  $region15: #{dominant_forward.18} parent=0 // pred_check_branch
    %228 = sbr.rel (0) target = $region17
  $region16: #{dominant_forward.18} parent=0 // pred_region
    _
  $region17: #{dominant_forward.18} parent=0 // pred_fallthru
    _
  // Predicated region
  $region18: #{dominant_forward.18} parent=0 // pred_check
    _
  $region19: #{dominant_forward.18} parent=0 // pred_check_branch
    %230 = sbr.rel (0) target = $region21
  $region20: #{dominant_forward.18} parent=0 // pred_region
    _
  $region21: #{dominant_forward.18} parent=0 // pred_fallthru
    _

// kernel: dominant_forward.12
$region0: #{dominant_forward.12}
  #allocation0 [shape = 'u32[]', space=smem, size = 0x4, offset = 0x4, fixed_abs, tag = 'smem constant byte address 0x4 - core index']
  #allocation1 [shape = 'u32[72,128]{1,0:T(1,128)}', space=vmem, size = 0x9000, scoped, tag = 'internal scratch']
  %s0 = inlined_call_operand.vmem [shape: bf16[128,128], index: 0, kind: input, shape index: {}]
  %s1 = inlined_call_operand.vmem [shape: bf16[128,128], index: 1, kind: input, shape index: {}]
  %s2 = inlined_call_operand.vmem [shape: f32[1,128], index: 2, kind: input, shape index: {}]
  %s3 = inlined_call_operand.vmem [shape: bf16[128,128], index: 3, kind: output, shape index: {}]
  %s4 = sld [smem:[#allocation0]]
  $region22: #{dominant_forward.12} parent=0
    _
  %s6 = ssub.s32 1, %s4
  %s7 = scalar_select 0, %s6, %s4
  // Predicated region
  $region2: #{dominant_forward.12} parent=0 // pred_check
    _
  $region3: #{dominant_forward.12} parent=0 // pred_check_branch
    %9 = sbr.rel (0) target = $region5
  $region4: #{dominant_forward.12} parent=0 // pred_region
    _
  $region5: #{dominant_forward.12} parent=0 // pred_fallthru
    _
  // Predicated region
  $region6: #{dominant_forward.12} parent=0 // pred_check
    _
  $region7: #{dominant_forward.12} parent=0 // pred_check_branch
    %11 = sbr.rel (0) target = $region9
  $region8: #{dominant_forward.12} parent=0 // pred_region
    _
  $region9: #{dominant_forward.12} parent=0 // pred_fallthru
    _
  // Predicated region
  $region10: #{dominant_forward.12} parent=0 // pred_check
    _
  $region11: #{dominant_forward.12} parent=0 // pred_check_branch
    %13 = sbr.rel (0) target = $region13
  $region12: #{dominant_forward.12} parent=0 // pred_region
    _
  $region13: #{dominant_forward.12} parent=0 // pred_fallthru
    _
  %v14 = vld [vmem:[%s0] sm:$0xf]
  %v15 = vld [vmem:[%s0 + $0x4] sm:$0xf]
  %v16 = vld [vmem:[%s0 + $0x8] sm:$0xf]
  %v17 = vld [vmem:[%s0 + $0xc] sm:$0xf]
  %v18 = vld [vmem:[%s0 + $0x10] sm:$0xf]
  %v19 = vld [vmem:[%s0 + $0x14] sm:$0xf]
  %v20 = vld [vmem:[%s0 + $0x18] sm:$0xf]
  %v21 = vld [vmem:[%s0 + $0x1c] sm:$0xf]
  %v22 = vld [vmem:[%s0 + $0x20] sm:$0xf]
  %v23 = vld [vmem:[%s0 + $0x24] sm:$0xf]
  %v24 = vld [vmem:[%s0 + $0x28] sm:$0xf]
  %v25 = vld [vmem:[%s0 + $0x2c] sm:$0xf]
  %v26 = vld [vmem:[%s0 + $0x30] sm:$0xf]
  %v27 = vld [vmem:[%s0 + $0x34] sm:$0xf]
  %v28 = vld [vmem:[%s0 + $0x38] sm:$0xf]
  %v29 = vld [vmem:[%s0 + $0x3c] sm:$0xf]
  %v30 = vld [vmem:[%s1] sm:$0xf]
  %v31 = vld [vmem:[%s1 + $0x4] sm:$0xf]
  %v32 = vld [vmem:[%s1 + $0x8] sm:$0xf]
  %v33 = vld [vmem:[%s1 + $0xc] sm:$0xf]
  %v34 = vld [vmem:[%s1 + $0x10] sm:$0xf]
  %v35 = vld [vmem:[%s1 + $0x14] sm:$0xf]
  %v36 = vld [vmem:[%s1 + $0x18] sm:$0xf]
  %v37 = vld [vmem:[%s1 + $0x1c] sm:$0xf]
  %v38 = vld [vmem:[%s1 + $0x20] sm:$0xf]
  %v39 = vld [vmem:[%s1 + $0x24] sm:$0xf]
  %v40 = vld [vmem:[%s1 + $0x28] sm:$0xf]
  %v41 = vld [vmem:[%s1 + $0x2c] sm:$0xf]
  %v42 = vld [vmem:[%s1 + $0x30] sm:$0xf]
  %v43 = vld [vmem:[%s1 + $0x34] sm:$0xf]
  %v44 = vld [vmem:[%s1 + $0x38] sm:$0xf]
  %v45 = vld [vmem:[%s1 + $0x3c] sm:$0xf]
  %v46 = vld [vmem:[%s2] sm:$0x1]
  %v48 = vperm.slane %v46, 0
  %v66 = vunpack.c.l.b16 %v14
  %v67 = vunpack.c.l.b16 %v15
  %v68 = vunpack.c.l.b16 %v16
  %v69 = vunpack.c.l.b16 %v17
  %v70 = vunpack.c.l.b16 %v18
  %v71 = vunpack.c.l.b16 %v19
  %v72 = vunpack.c.l.b16 %v20
  %v73 = vunpack.c.l.b16 %v21
  %v74 = vunpack.c.l.b16 %v22
  %v75 = vunpack.c.l.b16 %v23
  %v76 = vunpack.c.l.b16 %v24
  %v77 = vunpack.c.l.b16 %v25
  %v78 = vunpack.c.l.b16 %v26
  %v79 = vunpack.c.l.b16 %v27
  %v80 = vunpack.c.l.b16 %v28
  %v81 = vunpack.c.l.b16 %v29
  %v82 = vpack.c.b16 %v67, %v66
  %v83 = vpack.c.b16 %v69, %v68
  %v84 = vpack.c.b16 %v71, %v70
  %v85 = vpack.c.b16 %v73, %v72
  %v86 = vpack.c.b16 %v75, %v74
  %v87 = vpack.c.b16 %v77, %v76
  %v88 = vpack.c.b16 %v79, %v78
  %v89 = vpack.c.b16 %v81, %v80
  %v114 = vunpack.c.l.b16 %v30
  %v115 = vunpack.c.l.b16 %v31
  %v116 = vunpack.c.l.b16 %v32
  %v117 = vunpack.c.l.b16 %v33
  %v118 = vunpack.c.l.b16 %v34
  %v119 = vunpack.c.l.b16 %v35
  %v120 = vunpack.c.l.b16 %v36
  %v121 = vunpack.c.l.b16 %v37
  %v122 = vunpack.c.l.b16 %v38
  %v123 = vunpack.c.l.b16 %v39
  %v124 = vunpack.c.l.b16 %v40
  %v125 = vunpack.c.l.b16 %v41
  %v126 = vunpack.c.l.b16 %v42
  %v127 = vunpack.c.l.b16 %v43
  %v128 = vunpack.c.l.b16 %v44
  %v129 = vunpack.c.l.b16 %v45
  %v130 = vpack.c.b16 %v115, %v114
  %v131 = vpack.c.b16 %v117, %v116
  %v132 = vpack.c.b16 %v119, %v118
  %v133 = vpack.c.b16 %v121, %v120
  %v134 = vpack.c.b16 %v123, %v122
  %v135 = vpack.c.b16 %v125, %v124
  %v136 = vpack.c.b16 %v127, %v126
  %v137 = vpack.c.b16 %v129, %v128
  %146 = vmatpush.bf16.msra.mxu0 %v137
  %147 = vmatpush.bf16.msra.mxu0 %v136
  %148 = vmatpush.bf16.msra.mxu0 %v135
  %149 = vmatpush.bf16.msra.mxu0 %v134
  %150 = vmatpush.bf16.msra.mxu0 %v133
  %151 = vmatpush.bf16.msra.mxu0 %v132
  %152 = vmatpush.bf16.msra.mxu0 %v131
  %153 = vmatpush.bf16.msra.mxu0 %v130
  %154 = vmatmul.bf16.gmra.mxu0 %v82
  %v155 = vpop.f32.mrf.mxu0
  %v156 = vadd.f32 %v48, %v155
  %v157 = vpop.f32.mrf.mxu0
  %v158 = vadd.f32 %v48, %v157
  %159 = vmatmul.bf16.gmra.mxu0 %v83
  %v160 = vpop.f32.mrf.mxu0
  %v161 = vadd.f32 %v48, %v160
  %v162 = vpop.f32.mrf.mxu0
  %v163 = vadd.f32 %v48, %v162
  %164 = vmatmul.bf16.gmra.mxu0 %v84
  %v165 = vpop.f32.mrf.mxu0
  %v166 = vadd.f32 %v48, %v165
  %v167 = vpop.f32.mrf.mxu0
  %v168 = vadd.f32 %v48, %v167
  %169 = vmatmul.bf16.gmra.mxu0 %v85
  %v170 = vpop.f32.mrf.mxu0
  %v171 = vadd.f32 %v48, %v170
  %v172 = vpop.f32.mrf.mxu0
  %v173 = vadd.f32 %v48, %v172
  %174 = vmatmul.bf16.gmra.mxu0 %v86
  %v175 = vpop.f32.mrf.mxu0
  %v176 = vadd.f32 %v48, %v175
  %v177 = vpop.f32.mrf.mxu0
  %v178 = vadd.f32 %v48, %v177
  %179 = vmatmul.bf16.gmra.mxu0 %v87
  %v180 = vpop.f32.mrf.mxu0
  %v181 = vadd.f32 %v48, %v180
  %v182 = vpop.f32.mrf.mxu0
  %v183 = vadd.f32 %v48, %v182
  %184 = vmatmul.bf16.gmra.mxu0 %v88
  %v185 = vpop.f32.mrf.mxu0
  %v186 = vadd.f32 %v48, %v185
  %v187 = vpop.f32.mrf.mxu0
  %v188 = vadd.f32 %v48, %v187
  %189 = vmatmul.bf16.gmra.mxu0 %v89
  %v190 = vpop.f32.mrf.mxu0
  %v191 = vadd.f32 %v48, %v190
  %v192 = vpop.f32.mrf.mxu0
  %v193 = vadd.f32 %v48, %v192
  %194 = vdwg.mxu0
  %v195 = vmax.f32 %v156, 0.0
  %v196 = vmax.f32 %v158, 0.0
  %v197 = vmax.f32 %v161, 0.0
  %v198 = vmax.f32 %v163, 0.0
  %v199 = vmax.f32 %v166, 0.0
  %v200 = vmax.f32 %v168, 0.0
  %v201 = vmax.f32 %v171, 0.0
  %v202 = vmax.f32 %v173, 0.0
  %v203 = vmax.f32 %v176, 0.0
  %v204 = vmax.f32 %v178, 0.0
  %v205 = vmax.f32 %v181, 0.0
  %v206 = vmax.f32 %v183, 0.0
  %v207 = vmax.f32 %v186, 0.0
  %v208 = vmax.f32 %v188, 0.0
  %v209 = vmax.f32 %v191, 0.0
  %v210 = vmax.f32 %v193, 0.0
  %v211 = vpack.c.bf16 %v195, %v195
  %v212 = vpack.c.bf16 %v196, %v196
  %v213 = vpack.c.bf16 %v197, %v197
  %v214 = vpack.c.bf16 %v198, %v198
  %v215 = vpack.c.bf16 %v199, %v199
  %v216 = vpack.c.bf16 %v200, %v200
  %v217 = vpack.c.bf16 %v201, %v201
  %v218 = vpack.c.bf16 %v202, %v202
  %v219 = vpack.c.bf16 %v203, %v203
  %v220 = vpack.c.bf16 %v204, %v204
  %v221 = vpack.c.bf16 %v205, %v205
  %v222 = vpack.c.bf16 %v206, %v206
  %v223 = vpack.c.bf16 %v207, %v207
  %v224 = vpack.c.bf16 %v208, %v208
  %v225 = vpack.c.bf16 %v209, %v209
  %v226 = vpack.c.bf16 %v210, %v210
  %227 = vst [vmem:[%s3] sm:$0xf] %v211
  %228 = vst [vmem:[%s3 + $0x4] sm:$0xf] %v212
  %229 = vst [vmem:[%s3 + $0x8] sm:$0xf] %v213
  %230 = vst [vmem:[%s3 + $0xc] sm:$0xf] %v214
  %231 = vst [vmem:[%s3 + $0x10] sm:$0xf] %v215
  %232 = vst [vmem:[%s3 + $0x14] sm:$0xf] %v216
  %233 = vst [vmem:[%s3 + $0x18] sm:$0xf] %v217
  %234 = vst [vmem:[%s3 + $0x1c] sm:$0xf] %v218
  %235 = vst [vmem:[%s3 + $0x20] sm:$0xf] %v219
  %236 = vst [vmem:[%s3 + $0x24] sm:$0xf] %v220
  %237 = vst [vmem:[%s3 + $0x28] sm:$0xf] %v221
  %238 = vst [vmem:[%s3 + $0x2c] sm:$0xf] %v222
  %239 = vst [vmem:[%s3 + $0x30] sm:$0xf] %v223
  %240 = vst [vmem:[%s3 + $0x34] sm:$0xf] %v224
  %241 = vst [vmem:[%s3 + $0x38] sm:$0xf] %v225
  %242 = vst [vmem:[%s3 + $0x3c] sm:$0xf] %v226
  // Predicated region
  $region14: #{dominant_forward.12} parent=0 // pred_check
    _
  $region15: #{dominant_forward.12} parent=0 // pred_check_branch
    %244 = sbr.rel (0) target = $region17
  $region16: #{dominant_forward.12} parent=0 // pred_region
    _
  $region17: #{dominant_forward.12} parent=0 // pred_fallthru
    _
  // Predicated region
  $region18: #{dominant_forward.12} parent=0 // pred_check
    _
  $region19: #{dominant_forward.12} parent=0 // pred_check_branch
    %246 = sbr.rel (0) target = $region21
  $region20: #{dominant_forward.12} parent=0 // pred_region
    _
  $region21: #{dominant_forward.12} parent=0 // pred_fallthru
    _

</llo_original>
